<compile_context>
chip_gen: v6e
topology: v6e:2x2x1
jax: 0.10.0
libtpu: 0.0.40
codegen_flags: <defaults>
</compile_context>

<pallas_src>
import jax
import jax.numpy as jnp
from jax.experimental import pallas as pl
from jax.experimental.pallas import tpu as pltpu

N_OUT_PAD = 128  # lane-dense width for the 10-class output layer


def _silu(v):
    return v * jax.nn.sigmoid(v)


def _round_up(n, m):
    return (n + m - 1) // m * m


def _cdiv(a, b):
    return (a + b - 1) // b


def classifier_kernel(x_ref, w1_ref, b1_ref, w2_ref, b2_ref, w3_ref, b3_ref,
                      y_ref, h1_ref, h2_ref):
    # x arrives as f32 (no separate wrapper cast pass over HBM); cast to bf16 on the VPU
    # right before the MXU dot. All accumulation / elementwise math stays in f32.
    x = x_ref[...].astype(jnp.bfloat16)                                  # (TB, 784)

    # layer 1: Linear(784, 256) + SiLU
    z1 = jnp.dot(x, w1_ref[...], preferred_element_type=jnp.float32) + b1_ref[...]
    h1 = _silu(z1)                                                       # f32
    h1_ref[...] = h1.astype(h1_ref.dtype)                                # bf16 latent out

    # layer 2: Linear(256, 128) + SiLU
    z2 = (jnp.dot(h1.astype(jnp.bfloat16), w2_ref[...],
                  preferred_element_type=jnp.float32) + b2_ref[...])
    h2 = _silu(z2)
    h2_ref[...] = h2.astype(h2_ref.dtype)                                # bf16 latent out

    # Dropout (identity in eval) followed by another activation() call in forward()
    h2b = _silu(h2)

    # output layer: Linear(128, 10) lane-padded to 128, SiLU, masked softmax
    z3 = (jnp.dot(h2b.astype(jnp.bfloat16), w3_ref[...],
                  preferred_element_type=jnp.float32) + b3_ref[...])     # (TB, 128)
    a = _silu(z3)
    lane = jax.lax.broadcasted_iota(jnp.int32, a.shape, dimension=1)
    a = jnp.where(lane < 10, a, -1e30)                                   # mask padded lanes
    a = a - jnp.max(a, axis=-1, keepdims=True)
    e = jnp.exp(a)
    # Exact normalization: row sums == 1 to f32 precision (approx reciprocal was too coarse).
    y_ref[...] = e / jnp.sum(e, axis=-1, keepdims=True)


def prepare_params(params):
    """One-time weight prep, hoisted out of the per-call path:
    bf16 MXU copies of W1/W2, f32 biases, lane-padded (128-wide) W3/b3."""
    w1, b1, w2, b2, w3, b3 = params
    w1_bf = w1.astype(jnp.bfloat16)
    w2_bf = w2.astype(jnp.bfloat16)
    b1_f = b1.reshape(1, -1).astype(jnp.float32)
    b2_f = b2.reshape(1, -1).astype(jnp.float32)
    w3_pad = jnp.zeros((128, N_OUT_PAD), jnp.bfloat16).at[:, :10].set(w3.astype(jnp.bfloat16))
    b3_pad = jnp.zeros((1, N_OUT_PAD), jnp.float32).at[:, :10].set(
        b3.reshape(1, -1).astype(jnp.float32))
    return (w1_bf, b1_f, w2_bf, b2_f, w3_pad, b3_pad)


def classifier_forward(x, prepared_params):
    """x: (B, 1, 28, 28) or (B, 784). Returns (y (B,10) f32, [h1 (B,256) bf16, h2 (B,128) bf16])."""
    w1_bf, b1_f, w2_bf, b2_f, w3_pad, b3_pad = prepared_params
    B = x.shape[0]
    x2d = x.reshape(B, -1).astype(jnp.float32)           # torch.flatten(x, start_dim=1)
    assert x2d.shape[1] == 784

    # Batch tile: big enough to amortize per-step pipeline overhead, clamped so large batches
    # always produce >= 2 grid steps (v7x megacore), multiple of 16 (bf16 sublane packing).
    TB = min(1024, _round_up(max(_cdiv(B, 2), 1), 16))
    B_pad = _round_up(B, TB)
    if B_pad != B:
        x2d = jnp.pad(x2d, ((0, B_pad - B), (0, 0)))

    grid = (B_pad // TB,)

    y_pad, h1, h2 = pl.pallas_call(
        classifier_kernel,
        out_shape=(
            jax.ShapeDtypeStruct((B_pad, N_OUT_PAD), jnp.float32),
            jax.ShapeDtypeStruct((B_pad, 256), jnp.bfloat16),
            jax.ShapeDtypeStruct((B_pad, 128), jnp.bfloat16),
        ),
        grid_spec=pltpu.PrefetchScalarGridSpec(
            num_scalar_prefetch=0,
            grid=grid,
            in_specs=[
                pl.BlockSpec((TB, 784), lambda i: (i, 0)),         # x tile (f32, cast in-kernel)
                pl.BlockSpec((784, 256), lambda i: (0, 0)),        # W1 resident
                pl.BlockSpec((1, 256), lambda i: (0, 0)),          # b1 resident
                pl.BlockSpec((256, 128), lambda i: (0, 0)),        # W2 resident
                pl.BlockSpec((1, 128), lambda i: (0, 0)),          # b2 resident
                pl.BlockSpec((128, N_OUT_PAD), lambda i: (0, 0)),  # W3 (lane-padded) resident
                pl.BlockSpec((1, N_OUT_PAD), lambda i: (0, 0)),    # b3 (lane-padded) resident
            ],
            out_specs=[
                pl.BlockSpec((TB, N_OUT_PAD), lambda i: (i, 0)),   # y (lane-dense f32)
                pl.BlockSpec((TB, 256), lambda i: (i, 0)),         # h1 (bf16)
                pl.BlockSpec((TB, 128), lambda i: (i, 0)),         # h2 (bf16)
            ],
        ),
        compiler_params=pltpu.CompilerParams(
            dimension_semantics=("parallel",),
            vmem_limit_bytes=48 * 1024 * 1024),
    )(x2d, w1_bf, b1_f, w2_bf, b2_f, w3_pad, b3_pad)

    y = y_pad[:B, :10].reshape(-1, 10)
    return y, [h1[:B], h2[:B]]


def init_params(key):
    """Deterministic init mimicking torch.nn.Linear default (uniform +-1/sqrt(fan_in)).
    Weights stored transposed as (in, out); biases as (1, out)."""
    dims = [(784, 256), (256, 128), (128, 10)]
    params = []
    for i, (fin, fout) in enumerate(dims):
        kw, kb = jax.random.split(jax.random.fold_in(key, i))
        bound = 1.0 / (fin ** 0.5)
        w = jax.random.uniform(kw, (fin, fout), jnp.float32, -bound, bound)
        b = jax.random.uniform(kb, (1, fout), jnp.float32, -bound, bound)
        params += [w, b]
    return tuple(params)


def reference_forward(x, params):
    """Pure-JAX f32 reference of the PyTorch forward (eval mode)."""
    w1, b1, w2, b2, w3, b3 = params
    x2d = x.reshape(x.shape[0], -1).astype(jnp.float32)
    h1 = _silu(x2d @ w1 + b1)
    h2 = _silu(h1 @ w2 + b2)
    h2b = _silu(h2)
    y = jax.nn.softmax(_silu(h2b @ w3 + b3), axis=-1)
    return y.reshape(-1, 10), [h1, h2]


if __name__ == "__main__":
    key = jax.random.PRNGKey(0)
    kx, kp = jax.random.split(key)

    B = 2
    x = jax.random.normal(kx, (B, 1, 28, 28), jnp.float32)   # NCHW, MNIST-like
    params = init_params(kp)
    prepared = prepare_params(params)                         # one-time weight prep

    fwd = jax.jit(classifier_forward)
    y, latents = fwd(x, prepared)
    y = jax.block_until_ready(y)
    latents = [jax.block_until_ready(h) for h in latents]

    # sanity check against pure-JAX f32 reference (loosened tolerance: bf16 MXU operands / latents)
    y_ref, lat_ref = reference_forward(x, params)
    assert y.shape == (B, 10)
    assert latents[0].shape == (B, 256) and latents[1].shape == (B, 128)
    assert jnp.allclose(jnp.sum(y, axis=-1), 1.0, atol=1e-3)
    assert jnp.allclose(y, y_ref, atol=3e-2, rtol=3e-2)
    assert jnp.allclose(latents[0].astype(jnp.float32), lat_ref[0], atol=3e-2, rtol=3e-2)
    assert jnp.allclose(latents[1].astype(jnp.float32), lat_ref[1], atol=3e-2, rtol=3e-2)

    print("KERNEL_OK")
</pallas_src>

<mosaic_0001>
module attributes {stable_mosaic.version = 11 : i64} {
  func.func @classifier_kernel(%arg0: i32, %arg1: memref<16x784xf32, #tpu.memory_space<vmem>>, %arg2: memref<784x256xbf16, #tpu.memory_space<vmem>>, %arg3: memref<1x256xf32, #tpu.memory_space<vmem>>, %arg4: memref<256x128xbf16, #tpu.memory_space<vmem>>, %arg5: memref<1x128xf32, #tpu.memory_space<vmem>>, %arg6: memref<128x128xbf16, #tpu.memory_space<vmem>>, %arg7: memref<1x128xf32, #tpu.memory_space<vmem>>, %arg8: memref<16x128xf32, #tpu.memory_space<vmem>>, %arg9: memref<16x256xbf16, #tpu.memory_space<vmem>>, %arg10: memref<16x128xbf16, #tpu.memory_space<vmem>>) attributes {dimension_semantics = [#tpu.dimension_semantics<parallel>], iteration_bounds = array<i64: 1>, scalar_prefetch = 0 : i64, scratch_operands = 0 : i64, tpu.core_type = #tpu.core_type<tc>, window_params = [{transform_indices = @transform_0, window_bounds = array<i64: 16, 784>}, {pipeline_mode = #tpu.pipeline_mode<synchronous>, transform_indices = @transform_1, window_bounds = array<i64: 784, 256>}, {pipeline_mode = #tpu.pipeline_mode<synchronous>, transform_indices = @transform_2, window_bounds = array<i64: 1, 256>}, {pipeline_mode = #tpu.pipeline_mode<synchronous>, transform_indices = @transform_3, window_bounds = array<i64: 256, 128>}, {pipeline_mode = #tpu.pipeline_mode<synchronous>, transform_indices = @transform_4, window_bounds = array<i64: 1, 128>}, {pipeline_mode = #tpu.pipeline_mode<synchronous>, transform_indices = @transform_5, window_bounds = array<i64: 128, 128>}, {pipeline_mode = #tpu.pipeline_mode<synchronous>, transform_indices = @transform_6, window_bounds = array<i64: 1, 128>}, {transform_indices = @transform_7, window_bounds = array<i64: 16, 128>}, {transform_indices = @transform_8, window_bounds = array<i64: 16, 256>}, {transform_indices = @transform_9, window_bounds = array<i64: 16, 128>}]} {
    %c0 = arith.constant 0 : index
    %c0_0 = arith.constant 0 : index
    %0 = vector.load %arg1[%c0, %c0_0] : memref<16x784xf32, #tpu.memory_space<vmem>>, vector<16x784xf32>
    %1 = arith.truncf %0 : vector<16x784xf32> to vector<16x784xbf16>
    %c0_1 = arith.constant 0 : index
    %c0_2 = arith.constant 0 : index
    %2 = vector.load %arg2[%c0_1, %c0_2] : memref<784x256xbf16, #tpu.memory_space<vmem>>, vector<784x256xbf16>
    %cst = arith.constant dense<0.000000e+00> : vector<16x256xf32>
    %3 = tpu.matmul %1, %2, %cst {dimension_numbers = #tpu.dot_dimension_numbers<[1], [0], [0], [1], [0, 0, 1, 1], [], []>} : vector<16x784xbf16>, vector<784x256xbf16>, vector<16x256xf32> -> vector<16x256xf32>
    %c0_3 = arith.constant 0 : index
    %c0_4 = arith.constant 0 : index
    %4 = vector.load %arg3[%c0_3, %c0_4] : memref<1x256xf32, #tpu.memory_space<vmem>>, vector<1x256xf32>
    %5 = vector.broadcast %4 : vector<1x256xf32> to vector<16x256xf32>
    %6 = arith.addf %3, %5 : vector<16x256xf32>
    %7 = arith.negf %6 : vector<16x256xf32>
    %8 = math.exp %7 : vector<16x256xf32>
    %cst_5 = arith.constant 1.000000e+00 : f32
    %9 = vector.broadcast %cst_5 : f32 to vector<16x256xf32>
    %10 = arith.addf %9, %8 : vector<16x256xf32>
    %11 = arith.divf %9, %10 : vector<16x256xf32>
    %12 = arith.mulf %6, %11 : vector<16x256xf32>
    %13 = arith.truncf %12 : vector<16x256xf32> to vector<16x256xbf16>
    %c0_6 = arith.constant 0 : index
    %c0_7 = arith.constant 0 : index
    %14 = vector.load %arg9[%c0_6, %c0_7] : memref<16x256xbf16, #tpu.memory_space<vmem>>, vector<16x256xbf16>
    tpu.vector_store %arg9[%c0_6, %c0_7], %13 {strides = array<i32>} : memref<16x256xbf16, #tpu.memory_space<vmem>>, vector<16x256xbf16>,
    %15 = arith.truncf %12 : vector<16x256xf32> to vector<16x256xbf16>
    %c0_8 = arith.constant 0 : index
    %c0_9 = arith.constant 0 : index
    %16 = vector.load %arg4[%c0_8, %c0_9] : memref<256x128xbf16, #tpu.memory_space<vmem>>, vector<256x128xbf16>
    %cst_10 = arith.constant dense<0.000000e+00> : vector<16x128xf32>
    %17 = tpu.matmul %15, %16, %cst_10 {dimension_numbers = #tpu.dot_dimension_numbers<[1], [0], [0], [1], [0, 0, 1, 1], [], []>} : vector<16x256xbf16>, vector<256x128xbf16>, vector<16x128xf32> -> vector<16x128xf32>
    %c0_11 = arith.constant 0 : index
    %c0_12 = arith.constant 0 : index
    %18 = vector.load %arg5[%c0_11, %c0_12] : memref<1x128xf32, #tpu.memory_space<vmem>>, vector<1x128xf32>
    %19 = vector.broadcast %18 : vector<1x128xf32> to vector<16x128xf32>
    %20 = arith.addf %17, %19 : vector<16x128xf32>
    %21 = arith.negf %20 : vector<16x128xf32>
    %22 = math.exp %21 : vector<16x128xf32>
    %cst_13 = arith.constant 1.000000e+00 : f32
    %23 = vector.broadcast %cst_13 : f32 to vector<16x128xf32>
    %24 = arith.addf %23, %22 : vector<16x128xf32>
    %25 = arith.divf %23, %24 : vector<16x128xf32>
    %26 = arith.mulf %20, %25 : vector<16x128xf32>
    %27 = arith.truncf %26 : vector<16x128xf32> to vector<16x128xbf16>
    %c0_14 = arith.constant 0 : index
    %c0_15 = arith.constant 0 : index
    %28 = vector.load %arg10[%c0_14, %c0_15] : memref<16x128xbf16, #tpu.memory_space<vmem>>, vector<16x128xbf16>
    tpu.vector_store %arg10[%c0_14, %c0_15], %27 {strides = array<i32>} : memref<16x128xbf16, #tpu.memory_space<vmem>>, vector<16x128xbf16>,
    %29 = arith.negf %26 : vector<16x128xf32>
    %30 = math.exp %29 : vector<16x128xf32>
    %cst_16 = arith.constant 1.000000e+00 : f32
    %31 = vector.broadcast %cst_16 : f32 to vector<16x128xf32>
    %32 = arith.addf %31, %30 : vector<16x128xf32>
    %33 = arith.divf %31, %32 : vector<16x128xf32>
    %34 = arith.mulf %26, %33 : vector<16x128xf32>
    %35 = arith.truncf %34 : vector<16x128xf32> to vector<16x128xbf16>
    %c0_17 = arith.constant 0 : index
    %c0_18 = arith.constant 0 : index
    %36 = vector.load %arg6[%c0_17, %c0_18] : memref<128x128xbf16, #tpu.memory_space<vmem>>, vector<128x128xbf16>
    %cst_19 = arith.constant dense<0.000000e+00> : vector<16x128xf32>
    %37 = tpu.matmul %35, %36, %cst_19 {dimension_numbers = #tpu.dot_dimension_numbers<[1], [0], [0], [1], [0, 0, 1, 1], [], []>} : vector<16x128xbf16>, vector<128x128xbf16>, vector<16x128xf32> -> vector<16x128xf32>
    %c0_20 = arith.constant 0 : index
    %c0_21 = arith.constant 0 : index
    %38 = vector.load %arg7[%c0_20, %c0_21] : memref<1x128xf32, #tpu.memory_space<vmem>>, vector<1x128xf32>
    %39 = vector.broadcast %38 : vector<1x128xf32> to vector<16x128xf32>
    %40 = arith.addf %37, %39 : vector<16x128xf32>
    %41 = arith.negf %40 : vector<16x128xf32>
    %42 = math.exp %41 : vector<16x128xf32>
    %cst_22 = arith.constant 1.000000e+00 : f32
    %43 = vector.broadcast %cst_22 : f32 to vector<16x128xf32>
    %44 = arith.addf %43, %42 : vector<16x128xf32>
    %45 = arith.divf %43, %44 : vector<16x128xf32>
    %46 = arith.mulf %40, %45 : vector<16x128xf32>
    %47 = tpu.iota {dimensions = array<i32: 1>} : vector<16x128xi32>
    %c10_i32 = arith.constant 10 : i32
    %48 = vector.broadcast %c10_i32 : i32 to vector<16x128xi32>
    %49 = arith.cmpi slt, %47, %48 : vector<16x128xi32>
    %cst_23 = arith.constant -1.000000e+30 : f32
    %50 = vector.broadcast %cst_23 : f32 to vector<16x128xf32>
    %51 = arith.select %49, %46, %50 : vector<16x128xi1>, vector<16x128xf32>
    %cst_24 = arith.constant dense<0xFF800000> : vector<16xf32>
    %52 = vector.multi_reduction <maximumf>, %51, %cst_24 [1] : vector<16x128xf32> to vector<16xf32>
    %53 = vector.shape_cast %52 : vector<16xf32> to vector<16x1xf32>
    %54 = vector.broadcast %53 : vector<16x1xf32> to vector<16x128xf32>
    %55 = arith.subf %51, %54 : vector<16x128xf32>
    %56 = math.exp %55 : vector<16x128xf32>
    %cst_25 = arith.constant dense<0.000000e+00> : vector<16xf32>
    %57 = vector.multi_reduction <add>, %56, %cst_25 [1] : vector<16x128xf32> to vector<16xf32>
    %58 = vector.shape_cast %57 : vector<16xf32> to vector<16x1xf32>
    %59 = vector.broadcast %58 : vector<16x1xf32> to vector<16x128xf32>
    %60 = arith.divf %56, %59 : vector<16x128xf32>
    %c0_26 = arith.constant 0 : index
    %c0_27 = arith.constant 0 : index
    %61 = vector.load %arg8[%c0_26, %c0_27] : memref<16x128xf32, #tpu.memory_space<vmem>>, vector<16x128xf32>
    tpu.vector_store %arg8[%c0_26, %c0_27], %60 {strides = array<i32>} : memref<16x128xf32, #tpu.memory_space<vmem>>, vector<16x128xf32>,
    return
  }
  func.func @transform_0(%arg0: i32) -> (i32, i32) {
    %c0_i32 = arith.constant 0 : i32
    %c0_i32_0 = arith.constant 0 : i32
    return %arg0, %c0_i32 : i32, i32
  }
  func.func @transform_1(%arg0: i32) -> (i32, i32) {
    %c0_i32 = arith.constant 0 : i32
    %c0_i32_0 = arith.constant 0 : i32
    %c0_i32_1 = arith.constant 0 : i32
    return %c0_i32, %c0_i32_0 : i32, i32
  }
  func.func @transform_2(%arg0: i32) -> (i32, i32) {
    %c0_i32 = arith.constant 0 : i32
    %c0_i32_0 = arith.constant 0 : i32
    %c0_i32_1 = arith.constant 0 : i32
    return %c0_i32, %c0_i32_0 : i32, i32
  }
  func.func @transform_3(%arg0: i32) -> (i32, i32) {
    %c0_i32 = arith.constant 0 : i32
    %c0_i32_0 = arith.constant 0 : i32
    %c0_i32_1 = arith.constant 0 : i32
    return %c0_i32, %c0_i32_0 : i32, i32
  }
  func.func @transform_4(%arg0: i32) -> (i32, i32) {
    %c0_i32 = arith.constant 0 : i32
    %c0_i32_0 = arith.constant 0 : i32
    %c0_i32_1 = arith.constant 0 : i32
    return %c0_i32, %c0_i32_0 : i32, i32
  }
  func.func @transform_5(%arg0: i32) -> (i32, i32) {
    %c0_i32 = arith.constant 0 : i32
    %c0_i32_0 = arith.constant 0 : i32
    %c0_i32_1 = arith.constant 0 : i32
    return %c0_i32, %c0_i32_0 : i32, i32
  }
  func.func @transform_6(%arg0: i32) -> (i32, i32) {
    %c0_i32 = arith.constant 0 : i32
    %c0_i32_0 = arith.constant 0 : i32
    %c0_i32_1 = arith.constant 0 : i32
    return %c0_i32, %c0_i32_0 : i32, i32
  }
  func.func @transform_7(%arg0: i32) -> (i32, i32) {
    %c0_i32 = arith.constant 0 : i32
    %c0_i32_0 = arith.constant 0 : i32
    return %arg0, %c0_i32 : i32, i32
  }
  func.func @transform_8(%arg0: i32) -> (i32, i32) {
    %c0_i32 = arith.constant 0 : i32
    %c0_i32_0 = arith.constant 0 : i32
    return %arg0, %c0_i32 : i32, i32
  }
  func.func @transform_9(%arg0: i32) -> (i32, i32) {
    %c0_i32 = arith.constant 0 : i32
    %c0_i32_0 = arith.constant 0 : i32
    return %arg0, %c0_i32 : i32, i32
  }
}

</mosaic_0001>

<llo_original>
// kernel: classifier_forward.1
$region0: #{classifier_forward.1}
  #allocation0 [shape = 'u32[]', space=smem, size = 0x4, offset = 0x4, fixed_abs, tag = 'smem constant byte address 0x4 - core index']
  #allocation1 [shape = 'u32[144,128]{1,0:T(1,128)}', space=vmem, size = 0x12000, scoped, tag = 'internal scratch']
  %s0 = inlined_call_operand.vmem [shape: f32[16,784], index: 0, kind: input, shape index: {}]
  %s1 = inlined_call_operand.hbm [shape: bf16[784,256], index: 1, kind: input, shape index: {}]
  %s2 = inlined_call_operand.vmem [shape: f32[1,256], index: 2, kind: input, shape index: {}]
  %s3 = inlined_call_operand.vmem [shape: bf16[256,128], index: 3, kind: input, shape index: {}]
  %s4 = inlined_call_operand.vmem [shape: f32[1,128], index: 4, kind: input, shape index: {}]
  %s5 = inlined_call_operand.vmem [shape: bf16[128,128], index: 5, kind: input, shape index: {}]
  %s6 = inlined_call_operand.vmem [shape: f32[1,128], index: 6, kind: input, shape index: {}]
  %s7 = inlined_call_operand.vmem [shape: f32[16,128], index: 7, kind: output, shape index: {0}]
  %s8 = inlined_call_operand.vmem [shape: bf16[16,256], index: 8, kind: output, shape index: {1}]
  %s9 = inlined_call_operand.vmem [shape: bf16[16,128], index: 9, kind: output, shape index: {2}]
  %10 = xla_tuple %s7, %s8, %s9
  %s11 = sld [smem:[#allocation0]]
  $region58: #{classifier_forward.1} parent=0
    _
  %s13 = ssub.s32 1, %s11
  %s14 = scalar_select 0, %s13, %s11
  $region1: #{classifier_forward.1} parent=0
    #allocation2 [shape = 'u8[401408]{0}', space=vmem, size = 0x62000, scoped, tag = 'input window, operand 1, single buffered']
    #allocation3 [shape = 's32[1]{0}', space=sflag, size = 0x4, scoped, tag = 'scoped memory for classifier_forward.1']
    %15 = vsyncpa [#allocation3], 0
    // Predicated region
    $region2: #{classifier_forward.1} parent=1 // pred_check
      _
    $region3: #{classifier_forward.1} parent=1 // pred_check_branch
      %17 = sbr.rel (0) target = $region5
    $region4: #{classifier_forward.1} parent=1 // pred_region
      _
    $region5: #{classifier_forward.1} parent=1 // pred_fallthru
      _
    // Predicated region
    $region6: #{classifier_forward.1} parent=1 // pred_check
      _
    $region7: #{classifier_forward.1} parent=1 // pred_check_branch
      %19 = sbr.rel (0) target = $region9
    $region8: #{classifier_forward.1} parent=1 // pred_region
      %s21 = ssub.s32 12544, 12544
      %22 = vsyncadd [#allocation3], %s21
      %s23 = sshll.u32 [#allocation2], 4
      %s24 = int_to_ptr.vmem [resolvable:$true] %s23
      %29 = dma.hbm_to_vmem [thread:$0]  %s1, 12544, %s24, [#allocation3], 128, 128, 8
    $region9: #{classifier_forward.1} parent=1 // pred_fallthru
      _
    // Predicated region
    $region10: #{classifier_forward.1} parent=1 // pred_check
      _
    $region11: #{classifier_forward.1} parent=1 // pred_check_branch
      %31 = sbr.rel (0) target = $region13
    $region12: #{classifier_forward.1} parent=1 // pred_region
      _
    $region13: #{classifier_forward.1} parent=1 // pred_fallthru
      _
    // Predicated region
    $region14: #{classifier_forward.1} parent=1 // pred_check
      _
    $region15: #{classifier_forward.1} parent=1 // pred_check_branch
      %33 = sbr.rel (0) target = $region17
    $region16: #{classifier_forward.1} parent=1 // pred_region
      _
    $region17: #{classifier_forward.1} parent=1 // pred_fallthru
      _
    // Predicated region
    $region18: #{classifier_forward.1} parent=1 // pred_check
      _
    $region19: #{classifier_forward.1} parent=1 // pred_check_branch
      %35 = sbr.rel (0) target = $region21
    $region20: #{classifier_forward.1} parent=1 // pred_region
      _
    $region21: #{classifier_forward.1} parent=1 // pred_fallthru
      _
    // Predicated region
    $region22: #{classifier_forward.1} parent=1 // pred_check
      _
    $region23: #{classifier_forward.1} parent=1 // pred_check_branch
      %37 = sbr.rel (0) target = $region25
    $region24: #{classifier_forward.1} parent=1 // pred_region
      _
    $region25: #{classifier_forward.1} parent=1 // pred_fallthru
      _
    // Predicated region
    $region26: #{classifier_forward.1} parent=1 // pred_check
      _
    $region27: #{classifier_forward.1} parent=1 // pred_check_branch
      %39 = sbr.rel (0) target = $region29
    $region28: #{classifier_forward.1} parent=1 // pred_region
      _
    $region29: #{classifier_forward.1} parent=1 // pred_fallthru
      _
    // Predicated region
    $region30: #{classifier_forward.1} parent=1 // pred_check
      _
    $region31: #{classifier_forward.1} parent=1 // pred_check_branch
      %41 = sbr.rel (0) target = $region33
    $region32: #{classifier_forward.1} parent=1 // pred_region
      %42 = dma.done [#allocation3], 12544
    $region33: #{classifier_forward.1} parent=1 // pred_fallthru
      _
    %v44 = vld [vmem:[%s0] sm:$0xff]
    %v45 = vld [vmem:[%s0 + $0x8] sm:$0xff]
    %v46 = vld [vmem:[%s0 + $0x10] sm:$0xff]
    %v47 = vld [vmem:[%s0 + $0x18] sm:$0xff]
    %v48 = vld [vmem:[%s0 + $0x20] sm:$0xff]
    %v49 = vld [vmem:[%s0 + $0x28] sm:$0xff]
    %v50 = vld [vmem:[%s0 + $0x30] sm:$0xff]
    %v51 = vld [vmem:[%s0 + $0x38] sm:$0xff]
    %v52 = vld [vmem:[%s0 + $0x40] sm:$0xff]
    %v53 = vld [vmem:[%s0 + $0x48] sm:$0xff]
    %v54 = vld [vmem:[%s0 + $0x50] sm:$0xff]
    %v55 = vld [vmem:[%s0 + $0x58] sm:$0xff]
    %v56 = vld [vmem:[%s0 + $0x60] sm:$0xff]
    %v57 = vld [vmem:[%s0 + $0x68] sm:$0xff]
    %v58 = vpack.c.bf16 %v51, %v44
    %v59 = vpack.c.bf16 %v52, %v45
    %v60 = vpack.c.bf16 %v53, %v46
    %v61 = vpack.c.bf16 %v54, %v47
    %v62 = vpack.c.bf16 %v55, %v48
    %v63 = vpack.c.bf16 %v56, %v49
    %v64 = vpack.c.bf16 %v57, %v50
    %v65 = vld [vmem:[#allocation2] sm:$0xff]
    %v66 = vld [vmem:[#allocation2 + $0x8] sm:$0xff]
    %v67 = vld [vmem:[#allocation2 + $0x10] sm:$0xff]
    %v68 = vld [vmem:[#allocation2 + $0x18] sm:$0xff]
    %v69 = vld [vmem:[#allocation2 + $0x20] sm:$0xff]
    %v70 = vld [vmem:[#allocation2 + $0x28] sm:$0xff]
    %v71 = vld [vmem:[#allocation2 + $0x30] sm:$0xff]
    %v72 = vld [vmem:[#allocation2 + $0x38] sm:$0xff]
    %v73 = vld [vmem:[#allocation2 + $0x40] sm:$0xff]
    %v74 = vld [vmem:[#allocation2 + $0x48] sm:$0xff]
    %v75 = vld [vmem:[#allocation2 + $0x50] sm:$0xff]
    %v76 = vld [vmem:[#allocation2 + $0x58] sm:$0xff]
    %v77 = vld [vmem:[#allocation2 + $0x60] sm:$0xff]
    %v78 = vld [vmem:[#allocation2 + $0x68] sm:$0xff]
    %v79 = vld [vmem:[#allocation2 + $0x70] sm:$0xff]
    %v80 = vld [vmem:[#allocation2 + $0x78] sm:$0xff]
    %v81 = vld [vmem:[#allocation2 + $0x80] sm:$0xff]
    %v82 = vld [vmem:[#allocation2 + $0x88] sm:$0xff]
    %v83 = vld [vmem:[#allocation2 + $0x90] sm:$0xff]
    %v84 = vld [vmem:[#allocation2 + $0x98] sm:$0xff]
    %v85 = vld [vmem:[#allocation2 + $0xa0] sm:$0xff]
    %v86 = vld [vmem:[#allocation2 + $0xa8] sm:$0xff]
    %v87 = vld [vmem:[#allocation2 + $0xb0] sm:$0xff]
    %v88 = vld [vmem:[#allocation2 + $0xb8] sm:$0xff]
    %v89 = vld [vmem:[#allocation2 + $0xc0] sm:$0xff]
    %v90 = vld [vmem:[#allocation2 + $0xc8] sm:$0xff]
    %v91 = vld [vmem:[#allocation2 + $0xd0] sm:$0xff]
    %v92 = vld [vmem:[#allocation2 + $0xd8] sm:$0xff]
    %v93 = vld [vmem:[#allocation2 + $0xe0] sm:$0xff]
    %v94 = vld [vmem:[#allocation2 + $0xe8] sm:$0xff]
    %v95 = vld [vmem:[#allocation2 + $0xf0] sm:$0xff]
    %v96 = vld [vmem:[#allocation2 + $0xf8] sm:$0xff]
    %v97 = vld [vmem:[#allocation2 + $0x100] sm:$0xff]
    %v98 = vld [vmem:[#allocation2 + $0x108] sm:$0xff]
    %v99 = vld [vmem:[#allocation2 + $0x110] sm:$0xff]
    %v100 = vld [vmem:[#allocation2 + $0x118] sm:$0xff]
    %v101 = vld [vmem:[#allocation2 + $0x120] sm:$0xff]
    %v102 = vld [vmem:[#allocation2 + $0x128] sm:$0xff]
    %v103 = vld [vmem:[#allocation2 + $0x130] sm:$0xff]
    %v104 = vld [vmem:[#allocation2 + $0x138] sm:$0xff]
    %v105 = vld [vmem:[#allocation2 + $0x140] sm:$0xff]
    %v106 = vld [vmem:[#allocation2 + $0x148] sm:$0xff]
    %v107 = vld [vmem:[#allocation2 + $0x150] sm:$0xff]
    %v108 = vld [vmem:[#allocation2 + $0x158] sm:$0xff]
    %v109 = vld [vmem:[#allocation2 + $0x160] sm:$0xff]
    %v110 = vld [vmem:[#allocation2 + $0x168] sm:$0xff]
    %v111 = vld [vmem:[#allocation2 + $0x170] sm:$0xff]
    %v112 = vld [vmem:[#allocation2 + $0x178] sm:$0xff]
    %v113 = vld [vmem:[#allocation2 + $0x180] sm:$0xff]
    %v114 = vld [vmem:[#allocation2 + $0x188] sm:$0xff]
    %v115 = vld [vmem:[#allocation2 + $0x190] sm:$0xff]
    %v116 = vld [vmem:[#allocation2 + $0x198] sm:$0xff]
    %v117 = vld [vmem:[#allocation2 + $0x1a0] sm:$0xff]
    %v118 = vld [vmem:[#allocation2 + $0x1a8] sm:$0xff]
    %v119 = vld [vmem:[#allocation2 + $0x1b0] sm:$0xff]
    %v120 = vld [vmem:[#allocation2 + $0x1b8] sm:$0xff]
    %v121 = vld [vmem:[#allocation2 + $0x1c0] sm:$0xff]
    %v122 = vld [vmem:[#allocation2 + $0x1c8] sm:$0xff]
    %v123 = vld [vmem:[#allocation2 + $0x1d0] sm:$0xff]
    %v124 = vld [vmem:[#allocation2 + $0x1d8] sm:$0xff]
    %v125 = vld [vmem:[#allocation2 + $0x1e0] sm:$0xff]
    %v126 = vld [vmem:[#allocation2 + $0x1e8] sm:$0xff]
    %v127 = vld [vmem:[#allocation2 + $0x1f0] sm:$0xff]
    %v128 = vld [vmem:[#allocation2 + $0x1f8] sm:$0xff]
    %v129 = vld [vmem:[#allocation2 + $0x200] sm:$0xff]
    %v130 = vld [vmem:[#allocation2 + $0x208] sm:$0xff]
    %v131 = vld [vmem:[#allocation2 + $0x210] sm:$0xff]
    %v132 = vld [vmem:[#allocation2 + $0x218] sm:$0xff]
    %v133 = vld [vmem:[#allocation2 + $0x220] sm:$0xff]
    %v134 = vld [vmem:[#allocation2 + $0x228] sm:$0xff]
    %v135 = vld [vmem:[#allocation2 + $0x230] sm:$0xff]
    %v136 = vld [vmem:[#allocation2 + $0x238] sm:$0xff]
    %v137 = vld [vmem:[#allocation2 + $0x240] sm:$0xff]
    %v138 = vld [vmem:[#allocation2 + $0x248] sm:$0xff]
    %v139 = vld [vmem:[#allocation2 + $0x250] sm:$0xff]
    %v140 = vld [vmem:[#allocation2 + $0x258] sm:$0xff]
    %v141 = vld [vmem:[#allocation2 + $0x260] sm:$0xff]
    %v142 = vld [vmem:[#allocation2 + $0x268] sm:$0xff]
    %v143 = vld [vmem:[#allocation2 + $0x270] sm:$0xff]
    %v144 = vld [vmem:[#allocation2 + $0x278] sm:$0xff]
    %v145 = vld [vmem:[#allocation2 + $0x280] sm:$0xff]
    %v146 = vld [vmem:[#allocation2 + $0x288] sm:$0xff]
    %v147 = vld [vmem:[#allocation2 + $0x290] sm:$0xff]
    %v148 = vld [vmem:[#allocation2 + $0x298] sm:$0xff]
    %v149 = vld [vmem:[#allocation2 + $0x2a0] sm:$0xff]
    %v150 = vld [vmem:[#allocation2 + $0x2a8] sm:$0xff]
    %v151 = vld [vmem:[#allocation2 + $0x2b0] sm:$0xff]
    %v152 = vld [vmem:[#allocation2 + $0x2b8] sm:$0xff]
    %v153 = vld [vmem:[#allocation2 + $0x2c0] sm:$0xff]
    %v154 = vld [vmem:[#allocation2 + $0x2c8] sm:$0xff]
    %v155 = vld [vmem:[#allocation2 + $0x2d0] sm:$0xff]
    %v156 = vld [vmem:[#allocation2 + $0x2d8] sm:$0xff]
    %v157 = vld [vmem:[#allocation2 + $0x2e0] sm:$0xff]
    %v158 = vld [vmem:[#allocation2 + $0x2e8] sm:$0xff]
    %v159 = vld [vmem:[#allocation2 + $0x2f0] sm:$0xff]
    %v160 = vld [vmem:[#allocation2 + $0x2f8] sm:$0xff]
    %v161 = vld [vmem:[#allocation2 + $0x300] sm:$0xff]
    %v162 = vld [vmem:[#allocation2 + $0x308] sm:$0xff]
    %v163 = vld [vmem:[%s2] sm:$0x3]
    %v165 = vlaneseq
    %v166 = vshrl.u32 %v165, 7
    %v167 = vsub.s32 0, %v166
    %v168 = vrot.slane %v163, %v167
    %v169 = vlaneseq
    %v170 = vshrl.u32 %v169, 7
    %v171 = vsub.s32 1, %v170
    %v172 = vrot.slane %v163, %v171
    %v273 = vunpack.c.l.b16 %v65
    %v274 = vunpack.c.h.b16 %v65
    %v275 = vunpack.c.l.b16 %v66
    %v276 = vunpack.c.h.b16 %v66
    %v277 = vunpack.c.l.b16 %v67
    %v278 = vunpack.c.h.b16 %v67
    %v279 = vunpack.c.l.b16 %v68
    %v280 = vunpack.c.h.b16 %v68
    %v281 = vunpack.c.l.b16 %v69
    %v282 = vunpack.c.h.b16 %v69
    %v283 = vunpack.c.l.b16 %v70
    %v284 = vunpack.c.h.b16 %v70
    %v285 = vunpack.c.l.b16 %v71
    %v286 = vunpack.c.h.b16 %v71
    %v287 = vunpack.c.l.b16 %v72
    %v288 = vunpack.c.h.b16 %v72
    %v289 = vunpack.c.l.b16 %v73
    %v290 = vunpack.c.h.b16 %v73
    %v291 = vunpack.c.l.b16 %v74
    %v292 = vunpack.c.h.b16 %v74
    %v293 = vunpack.c.l.b16 %v75
    %v294 = vunpack.c.h.b16 %v75
    %v295 = vunpack.c.l.b16 %v76
    %v296 = vunpack.c.h.b16 %v76
    %v297 = vunpack.c.l.b16 %v77
    %v298 = vunpack.c.h.b16 %v77
    %v299 = vunpack.c.l.b16 %v78
    %v300 = vunpack.c.h.b16 %v78
    %v301 = vunpack.c.l.b16 %v79
    %v302 = vunpack.c.h.b16 %v79
    %v303 = vunpack.c.l.b16 %v80
    %v304 = vunpack.c.h.b16 %v80
    %v305 = vunpack.c.l.b16 %v81
    %v306 = vunpack.c.h.b16 %v81
    %v307 = vunpack.c.l.b16 %v82
    %v308 = vunpack.c.h.b16 %v82
    %v309 = vunpack.c.l.b16 %v83
    %v310 = vunpack.c.h.b16 %v83
    %v311 = vunpack.c.l.b16 %v84
    %v312 = vunpack.c.h.b16 %v84
    %v313 = vunpack.c.l.b16 %v85
    %v314 = vunpack.c.h.b16 %v85
    %v315 = vunpack.c.l.b16 %v86
    %v316 = vunpack.c.h.b16 %v86
    %v317 = vunpack.c.l.b16 %v87
    %v318 = vunpack.c.h.b16 %v87
    %v319 = vunpack.c.l.b16 %v88
    %v320 = vunpack.c.h.b16 %v88
    %v321 = vunpack.c.l.b16 %v89
    %v322 = vunpack.c.h.b16 %v89
    %v323 = vunpack.c.l.b16 %v90
    %v324 = vunpack.c.h.b16 %v90
    %v325 = vunpack.c.l.b16 %v91
    %v326 = vunpack.c.h.b16 %v91
    %v327 = vunpack.c.l.b16 %v92
    %v328 = vunpack.c.h.b16 %v92
    %v329 = vunpack.c.l.b16 %v93
    %v330 = vunpack.c.h.b16 %v93
    %v331 = vunpack.c.l.b16 %v94
    %v332 = vunpack.c.h.b16 %v94
    %v333 = vunpack.c.l.b16 %v95
    %v334 = vunpack.c.h.b16 %v95
    %v335 = vunpack.c.l.b16 %v96
    %v336 = vunpack.c.h.b16 %v96
    %v337 = vunpack.c.l.b16 %v97
    %v338 = vunpack.c.h.b16 %v97
    %v339 = vunpack.c.l.b16 %v98
    %v340 = vunpack.c.h.b16 %v98
    %v341 = vunpack.c.l.b16 %v99
    %v342 = vunpack.c.h.b16 %v99
    %v343 = vunpack.c.l.b16 %v100
    %v344 = vunpack.c.h.b16 %v100
    %v345 = vunpack.c.l.b16 %v101
    %v346 = vunpack.c.h.b16 %v101
    %v347 = vunpack.c.l.b16 %v102
    %v348 = vunpack.c.h.b16 %v102
    %v349 = vunpack.c.l.b16 %v103
    %v350 = vunpack.c.h.b16 %v103
    %v351 = vunpack.c.l.b16 %v104
    %v352 = vunpack.c.h.b16 %v104
    %v353 = vunpack.c.l.b16 %v105
    %v354 = vunpack.c.h.b16 %v105
    %v355 = vunpack.c.l.b16 %v106
    %v356 = vunpack.c.h.b16 %v106
    %v357 = vunpack.c.l.b16 %v107
    %v358 = vunpack.c.h.b16 %v107
    %v359 = vunpack.c.l.b16 %v108
    %v360 = vunpack.c.h.b16 %v108
    %v361 = vunpack.c.l.b16 %v109
    %v362 = vunpack.c.h.b16 %v109
    %v363 = vunpack.c.l.b16 %v110
    %v364 = vunpack.c.h.b16 %v110
    %v365 = vunpack.c.l.b16 %v111
    %v366 = vunpack.c.h.b16 %v111
    %v367 = vunpack.c.l.b16 %v112
    %v368 = vunpack.c.h.b16 %v112
    %v369 = vunpack.c.l.b16 %v113
    %v370 = vunpack.c.h.b16 %v113
    %v371 = vunpack.c.l.b16 %v114
    %v372 = vunpack.c.h.b16 %v114
    %v373 = vunpack.c.l.b16 %v115
    %v374 = vunpack.c.h.b16 %v115
    %v375 = vunpack.c.l.b16 %v116
    %v376 = vunpack.c.h.b16 %v116
    %v377 = vunpack.c.l.b16 %v117
    %v378 = vunpack.c.h.b16 %v117
    %v379 = vunpack.c.l.b16 %v118
    %v380 = vunpack.c.h.b16 %v118
    %v381 = vunpack.c.l.b16 %v119
    %v382 = vunpack.c.h.b16 %v119
    %v383 = vunpack.c.l.b16 %v120
    %v384 = vunpack.c.h.b16 %v120
    %v385 = vunpack.c.l.b16 %v121
    %v386 = vunpack.c.h.b16 %v121
    %v387 = vunpack.c.l.b16 %v122
    %v388 = vunpack.c.h.b16 %v122
    %v389 = vunpack.c.l.b16 %v123
    %v390 = vunpack.c.h.b16 %v123
    %v391 = vunpack.c.l.b16 %v124
    %v392 = vunpack.c.h.b16 %v124
    %v393 = vunpack.c.l.b16 %v125
    %v394 = vunpack.c.h.b16 %v125
    %v395 = vunpack.c.l.b16 %v126
    %v396 = vunpack.c.h.b16 %v126
    %v397 = vunpack.c.l.b16 %v127
    %v398 = vunpack.c.h.b16 %v127
    %v399 = vunpack.c.l.b16 %v128
    %v400 = vunpack.c.h.b16 %v128
    %v401 = vunpack.c.l.b16 %v129
    %v402 = vunpack.c.h.b16 %v129
    %v403 = vunpack.c.l.b16 %v130
    %v404 = vunpack.c.h.b16 %v130
    %v405 = vunpack.c.l.b16 %v131
    %v406 = vunpack.c.h.b16 %v131
    %v407 = vunpack.c.l.b16 %v132
    %v408 = vunpack.c.h.b16 %v132
    %v409 = vunpack.c.l.b16 %v133
    %v410 = vunpack.c.h.b16 %v133
    %v411 = vunpack.c.l.b16 %v134
    %v412 = vunpack.c.h.b16 %v134
    %v413 = vunpack.c.l.b16 %v135
    %v414 = vunpack.c.h.b16 %v135
    %v415 = vunpack.c.l.b16 %v136
    %v416 = vunpack.c.h.b16 %v136
    %v417 = vunpack.c.l.b16 %v137
    %v418 = vunpack.c.h.b16 %v137
    %v419 = vunpack.c.l.b16 %v138
    %v420 = vunpack.c.h.b16 %v138
    %v421 = vunpack.c.l.b16 %v139
    %v422 = vunpack.c.h.b16 %v139
    %v423 = vunpack.c.l.b16 %v140
    %v424 = vunpack.c.h.b16 %v140
    %v425 = vunpack.c.l.b16 %v141
    %v426 = vunpack.c.h.b16 %v141
    %v427 = vunpack.c.l.b16 %v142
    %v428 = vunpack.c.h.b16 %v142
    %v429 = vunpack.c.l.b16 %v143
    %v430 = vunpack.c.h.b16 %v143
    %v431 = vunpack.c.l.b16 %v144
    %v432 = vunpack.c.h.b16 %v144
    %v433 = vunpack.c.l.b16 %v145
    %v434 = vunpack.c.h.b16 %v145
    %v435 = vunpack.c.l.b16 %v146
    %v436 = vunpack.c.h.b16 %v146
    %v437 = vunpack.c.l.b16 %v147
    %v438 = vunpack.c.h.b16 %v147
    %v439 = vunpack.c.l.b16 %v148
    %v440 = vunpack.c.h.b16 %v148
    %v441 = vunpack.c.l.b16 %v149
    %v442 = vunpack.c.h.b16 %v149
    %v443 = vunpack.c.l.b16 %v150
    %v444 = vunpack.c.h.b16 %v150
    %v445 = vunpack.c.l.b16 %v151
    %v446 = vunpack.c.h.b16 %v151
    %v447 = vunpack.c.l.b16 %v152
    %v448 = vunpack.c.h.b16 %v152
    %v449 = vunpack.c.l.b16 %v153
    %v450 = vunpack.c.h.b16 %v153
    %v451 = vunpack.c.l.b16 %v154
    %v452 = vunpack.c.h.b16 %v154
    %v453 = vunpack.c.l.b16 %v155
    %v454 = vunpack.c.h.b16 %v155
    %v455 = vunpack.c.l.b16 %v156
    %v456 = vunpack.c.h.b16 %v156
    %v457 = vunpack.c.l.b16 %v157
    %v458 = vunpack.c.h.b16 %v157
    %v459 = vunpack.c.l.b16 %v158
    %v460 = vunpack.c.h.b16 %v158
    %v461 = vunpack.c.l.b16 %v159
    %v462 = vunpack.c.h.b16 %v159
    %v463 = vunpack.c.l.b16 %v160
    %v464 = vunpack.c.h.b16 %v160
    %v465 = vunpack.c.l.b16 %v161
    %v466 = vunpack.c.h.b16 %v161
    %v467 = vunpack.c.l.b16 %v162
    %v468 = vunpack.c.h.b16 %v162
    %v469 = vpack.c.b16 %v275, %v273
    %v470 = vpack.c.b16 %v276, %v274
    %v471 = vpack.c.b16 %v279, %v277
    %v472 = vpack.c.b16 %v280, %v278
    %v473 = vpack.c.b16 %v283, %v281
    %v474 = vpack.c.b16 %v284, %v282
    %v475 = vpack.c.b16 %v287, %v285
    %v476 = vpack.c.b16 %v288, %v286
    %v477 = vpack.c.b16 %v291, %v289
    %v478 = vpack.c.b16 %v292, %v290
    %v479 = vpack.c.b16 %v295, %v293
    %v480 = vpack.c.b16 %v296, %v294
    %v481 = vpack.c.b16 %v299, %v297
    %v482 = vpack.c.b16 %v300, %v298
    %v483 = vpack.c.b16 %v303, %v301
    %v484 = vpack.c.b16 %v304, %v302
    %v485 = vpack.c.b16 %v307, %v305
    %v486 = vpack.c.b16 %v308, %v306
    %v487 = vpack.c.b16 %v311, %v309
    %v488 = vpack.c.b16 %v312, %v310
    %v489 = vpack.c.b16 %v315, %v313
    %v490 = vpack.c.b16 %v316, %v314
    %v491 = vpack.c.b16 %v319, %v317
    %v492 = vpack.c.b16 %v320, %v318
    %v493 = vpack.c.b16 %v323, %v321
    %v494 = vpack.c.b16 %v324, %v322
    %v495 = vpack.c.b16 %v327, %v325
    %v496 = vpack.c.b16 %v328, %v326
    %v497 = vpack.c.b16 %v331, %v329
    %v498 = vpack.c.b16 %v332, %v330
    %v499 = vpack.c.b16 %v335, %v333
    %v500 = vpack.c.b16 %v336, %v334
    %v501 = vpack.c.b16 %v339, %v337
    %v502 = vpack.c.b16 %v340, %v338
    %v503 = vpack.c.b16 %v343, %v341
    %v504 = vpack.c.b16 %v344, %v342
    %v505 = vpack.c.b16 %v347, %v345
    %v506 = vpack.c.b16 %v348, %v346
    %v507 = vpack.c.b16 %v351, %v349
    %v508 = vpack.c.b16 %v352, %v350
    %v509 = vpack.c.b16 %v355, %v353
    %v510 = vpack.c.b16 %v356, %v354
    %v511 = vpack.c.b16 %v359, %v357
    %v512 = vpack.c.b16 %v360, %v358
    %v513 = vpack.c.b16 %v363, %v361
    %v514 = vpack.c.b16 %v364, %v362
    %v515 = vpack.c.b16 %v367, %v365
    %v516 = vpack.c.b16 %v368, %v366
    %v517 = vpack.c.b16 %v371, %v369
    %v518 = vpack.c.b16 %v372, %v370
    %v519 = vpack.c.b16 %v375, %v373
    %v520 = vpack.c.b16 %v376, %v374
    %v521 = vpack.c.b16 %v379, %v377
    %v522 = vpack.c.b16 %v380, %v378
    %v523 = vpack.c.b16 %v383, %v381
    %v524 = vpack.c.b16 %v384, %v382
    %v525 = vpack.c.b16 %v387, %v385
    %v526 = vpack.c.b16 %v388, %v386
    %v527 = vpack.c.b16 %v391, %v389
    %v528 = vpack.c.b16 %v392, %v390
    %v529 = vpack.c.b16 %v395, %v393
    %v530 = vpack.c.b16 %v396, %v394
    %v531 = vpack.c.b16 %v399, %v397
    %v532 = vpack.c.b16 %v400, %v398
    %v533 = vpack.c.b16 %v403, %v401
    %v534 = vpack.c.b16 %v404, %v402
    %v535 = vpack.c.b16 %v407, %v405
    %v536 = vpack.c.b16 %v408, %v406
    %v537 = vpack.c.b16 %v411, %v409
    %v538 = vpack.c.b16 %v412, %v410
    %v539 = vpack.c.b16 %v415, %v413
    %v540 = vpack.c.b16 %v416, %v414
    %v541 = vpack.c.b16 %v419, %v417
    %v542 = vpack.c.b16 %v420, %v418
    %v543 = vpack.c.b16 %v423, %v421
    %v544 = vpack.c.b16 %v424, %v422
    %v545 = vpack.c.b16 %v427, %v425
    %v546 = vpack.c.b16 %v428, %v426
    %v547 = vpack.c.b16 %v431, %v429
    %v548 = vpack.c.b16 %v432, %v430
    %v549 = vpack.c.b16 %v435, %v433
    %v550 = vpack.c.b16 %v436, %v434
    %v551 = vpack.c.b16 %v439, %v437
    %v552 = vpack.c.b16 %v440, %v438
    %v553 = vpack.c.b16 %v443, %v441
    %v554 = vpack.c.b16 %v444, %v442
    %v555 = vpack.c.b16 %v447, %v445
    %v556 = vpack.c.b16 %v448, %v446
    %v557 = vpack.c.b16 %v451, %v449
    %v558 = vpack.c.b16 %v452, %v450
    %v559 = vpack.c.b16 %v455, %v453
    %v560 = vpack.c.b16 %v456, %v454
    %v561 = vpack.c.b16 %v459, %v457
    %v562 = vpack.c.b16 %v460, %v458
    %v563 = vpack.c.b16 %v463, %v461
    %v564 = vpack.c.b16 %v464, %v462
    %v565 = vpack.c.b16 %v467, %v465
    %v566 = vpack.c.b16 %v468, %v466
    %vm665 = vcmask 130048
    %v667 = vsel %vm665, %v64, 0
    %669 = vmatprep.subr.bf16.mxu0 %v484
    %670 = vmatpush1.bf16.msra.mxu0 %v483
    %671 = vmatprep.subr.bf16.mxu0 %v482
    %672 = vmatpush1.bf16.msra.mxu0 %v481
    %673 = vmatprep.subr.bf16.mxu0 %v480
    %674 = vmatpush1.bf16.msra.mxu0 %v479
    %675 = vmatprep.subr.bf16.mxu0 %v478
    %676 = vmatpush1.bf16.msra.mxu0 %v477
    %677 = vmatprep.subr.bf16.mxu0 %v476
    %678 = vmatpush1.bf16.msra.mxu0 %v475
    %679 = vmatprep.subr.bf16.mxu0 %v474
    %680 = vmatpush1.bf16.msra.mxu0 %v473
    %681 = vmatprep.subr.bf16.mxu0 %v472
    %682 = vmatpush1.bf16.msra.mxu0 %v471
    %683 = vmatprep.subr.bf16.mxu0 %v470
    %684 = vmatpush1.bf16.msra.mxu0 %v469
    %685 = vmatprep.subr.bf16.mxu0 %v500
    %686 = vmatpush2.bf16.msra.mxu0 %v499
    %687 = vmatprep.subr.bf16.mxu0 %v498
    %688 = vmatpush2.bf16.msra.mxu0 %v497
    %689 = vmatprep.subr.bf16.mxu0 %v496
    %690 = vmatpush2.bf16.msra.mxu0 %v495
    %691 = vmatprep.subr.bf16.mxu0 %v494
    %692 = vmatpush2.bf16.msra.mxu0 %v493
    %693 = vmatprep.subr.bf16.mxu0 %v492
    %694 = vmatpush2.bf16.msra.mxu0 %v491
    %695 = vmatprep.subr.bf16.mxu0 %v490
    %696 = vmatpush2.bf16.msra.mxu0 %v489
    %697 = vmatprep.subr.bf16.mxu0 %v488
    %698 = vmatpush2.bf16.msra.mxu0 %v487
    %699 = vmatprep.subr.bf16.mxu0 %v486
    %700 = vmatpush2.bf16.msra.mxu0 %v485
    %701 = vmatprep.mubr.bf16.mxu0 %v59
    %702 = vmatmul.mubr.bf16.gmra.mxu0 %v58
    %v703 = vpop.f32.mrf.mxu0
    %v704 = vadd.f32 %v168, %v703
    %v705 = vpop.f32.mrf.mxu0
    %v706 = vadd.f32 %v172, %v705
    %v707 = vpop.f32.mrf.mxu0
    %v708 = vadd.f32 %v168, %v707
    %v709 = vpop.f32.mrf.mxu0
    %v710 = vadd.f32 %v172, %v709
    %711 = vdwg.mxu0
    %712 = vmatprep.subr.bf16.mxu0 %v516
    %713 = vmatpush1.bf16.msra.mxu0 %v515
    %714 = vmatprep.subr.bf16.mxu0 %v514
    %715 = vmatpush1.bf16.msra.mxu0 %v513
    %716 = vmatprep.subr.bf16.mxu0 %v512
    %717 = vmatpush1.bf16.msra.mxu0 %v511
    %718 = vmatprep.subr.bf16.mxu0 %v510
    %719 = vmatpush1.bf16.msra.mxu0 %v509
    %720 = vmatprep.subr.bf16.mxu0 %v508
    %721 = vmatpush1.bf16.msra.mxu0 %v507
    %722 = vmatprep.subr.bf16.mxu0 %v506
    %723 = vmatpush1.bf16.msra.mxu0 %v505
    %724 = vmatprep.subr.bf16.mxu0 %v504
    %725 = vmatpush1.bf16.msra.mxu0 %v503
    %726 = vmatprep.subr.bf16.mxu0 %v502
    %727 = vmatpush1.bf16.msra.mxu0 %v501
    %728 = vmatprep.subr.bf16.mxu0 %v532
    %729 = vmatpush2.bf16.msra.mxu0 %v531
    %730 = vmatprep.subr.bf16.mxu0 %v530
    %731 = vmatpush2.bf16.msra.mxu0 %v529
    %732 = vmatprep.subr.bf16.mxu0 %v528
    %733 = vmatpush2.bf16.msra.mxu0 %v527
    %734 = vmatprep.subr.bf16.mxu0 %v526
    %735 = vmatpush2.bf16.msra.mxu0 %v525
    %736 = vmatprep.subr.bf16.mxu0 %v524
    %737 = vmatpush2.bf16.msra.mxu0 %v523
    %738 = vmatprep.subr.bf16.mxu0 %v522
    %739 = vmatpush2.bf16.msra.mxu0 %v521
    %740 = vmatprep.subr.bf16.mxu0 %v520
    %741 = vmatpush2.bf16.msra.mxu0 %v519
    %742 = vmatprep.subr.bf16.mxu0 %v518
    %743 = vmatpush2.bf16.msra.mxu0 %v517
    %744 = vmatprep.mubr.bf16.mxu0 %v61
    %745 = vmatmul.mubr.bf16.gmra.mxu0 %v60
    %v746 = vpop.f32.mrf.mxu0
    %v747 = vadd.f32 %v704, %v746
    %v748 = vpop.f32.mrf.mxu0
    %v749 = vadd.f32 %v706, %v748
    %v750 = vpop.f32.mrf.mxu0
    %v751 = vadd.f32 %v708, %v750
    %v752 = vpop.f32.mrf.mxu0
    %v753 = vadd.f32 %v710, %v752
    %754 = vdwg.mxu0
    %755 = vmatprep.subr.bf16.mxu0 %v548
    %756 = vmatpush1.bf16.msra.mxu0 %v547
    %757 = vmatprep.subr.bf16.mxu0 %v546
    %758 = vmatpush1.bf16.msra.mxu0 %v545
    %759 = vmatprep.subr.bf16.mxu0 %v544
    %760 = vmatpush1.bf16.msra.mxu0 %v543
    %761 = vmatprep.subr.bf16.mxu0 %v542
    %762 = vmatpush1.bf16.msra.mxu0 %v541
    %763 = vmatprep.subr.bf16.mxu0 %v540
    %764 = vmatpush1.bf16.msra.mxu0 %v539
    %765 = vmatprep.subr.bf16.mxu0 %v538
    %766 = vmatpush1.bf16.msra.mxu0 %v537
    %767 = vmatprep.subr.bf16.mxu0 %v536
    %768 = vmatpush1.bf16.msra.mxu0 %v535
    %769 = vmatprep.subr.bf16.mxu0 %v534
    %770 = vmatpush1.bf16.msra.mxu0 %v533
    %771 = vmatprep.subr.bf16.mxu0 %v564
    %772 = vmatpush2.bf16.msra.mxu0 %v563
    %773 = vmatprep.subr.bf16.mxu0 %v562
    %774 = vmatpush2.bf16.msra.mxu0 %v561
    %775 = vmatprep.subr.bf16.mxu0 %v560
    %776 = vmatpush2.bf16.msra.mxu0 %v559
    %777 = vmatprep.subr.bf16.mxu0 %v558
    %778 = vmatpush2.bf16.msra.mxu0 %v557
    %779 = vmatprep.subr.bf16.mxu0 %v556
    %780 = vmatpush2.bf16.msra.mxu0 %v555
    %781 = vmatprep.subr.bf16.mxu0 %v554
    %782 = vmatpush2.bf16.msra.mxu0 %v553
    %783 = vmatprep.subr.bf16.mxu0 %v552
    %784 = vmatpush2.bf16.msra.mxu0 %v551
    %785 = vmatprep.subr.bf16.mxu0 %v550
    %786 = vmatpush2.bf16.msra.mxu0 %v549
    %787 = vmatprep.mubr.bf16.mxu0 %v63
    %788 = vmatmul.mubr.bf16.gmra.mxu0 %v62
    %v789 = vpop.f32.mrf.mxu0
    %v790 = vadd.f32 %v747, %v789
    %v791 = vpop.f32.mrf.mxu0
    %v792 = vadd.f32 %v749, %v791
    %v793 = vpop.f32.mrf.mxu0
    %v794 = vadd.f32 %v751, %v793
    %v795 = vpop.f32.mrf.mxu0
    %v796 = vadd.f32 %v753, %v795
    %797 = vdwg.mxu0
    %798 = vmatprep.subr.bf16.mxu0 0
    %799 = vmatpush1.bf16.msra.mxu0 0
    %800 = vmatprep.subr.bf16.mxu0 0
    %801 = vmatpush1.bf16.msra.mxu0 0
    %802 = vmatprep.subr.bf16.mxu0 0
    %803 = vmatpush1.bf16.msra.mxu0 0
    %804 = vmatprep.subr.bf16.mxu0 0
    %805 = vmatpush1.bf16.msra.mxu0 0
    %806 = vmatprep.subr.bf16.mxu0 0
    %807 = vmatpush1.bf16.msra.mxu0 0
    %808 = vmatprep.subr.bf16.mxu0 0
    %809 = vmatpush1.bf16.msra.mxu0 0
    %810 = vmatprep.subr.bf16.mxu0 0
    %811 = vmatpush1.bf16.msra.mxu0 0
    %812 = vmatprep.subr.bf16.mxu0 %v566
    %813 = vmatpush1.bf16.msra.mxu0 %v565
    %814 = vmatprep.subr.bf16.mxu0 0
    %815 = vmatpush2.bf16.msra.mxu0 0
    %816 = vmatprep.subr.bf16.mxu0 0
    %817 = vmatpush2.bf16.msra.mxu0 0
    %818 = vmatprep.subr.bf16.mxu0 0
    %819 = vmatpush2.bf16.msra.mxu0 0
    %820 = vmatprep.subr.bf16.mxu0 0
    %821 = vmatpush2.bf16.msra.mxu0 0
    %822 = vmatprep.subr.bf16.mxu0 0
    %823 = vmatpush2.bf16.msra.mxu0 0
    %824 = vmatprep.subr.bf16.mxu0 0
    %825 = vmatpush2.bf16.msra.mxu0 0
    %826 = vmatprep.subr.bf16.mxu0 0
    %827 = vmatpush2.bf16.msra.mxu0 0
    %828 = vmatprep.subr.bf16.mxu0 0
    %829 = vmatpush2.bf16.msra.mxu0 0
    %830 = vmatprep.mubr.bf16.mxu0 0
    %831 = vmatmul.mubr.bf16.gmra.mxu0 %v667
    %v832 = vpop.f32.mrf.mxu0
    %v833 = vadd.f32 %v790, %v832
    %v834 = vpop.f32.mrf.mxu0
    %v835 = vadd.f32 %v792, %v834
    %v836 = vpop.f32.mrf.mxu0
    %v837 = vadd.f32 %v794, %v836
    %v838 = vpop.f32.mrf.mxu0
    %v839 = vadd.f32 %v796, %v838
    %840 = vdwg.mxu0
    %v841 = vxor.u32 %v833, 2147483648
    %v842 = vxor.u32 %v835, 2147483648
    %v843 = vxor.u32 %v837, 2147483648
    %v844 = vxor.u32 %v839, 2147483648
    %v845 = vmul.f32 %v841, 1.442695
    %v846 = vpow.pop %v845
    %v847 = vmul.f32 %v842, 1.442695
    %v848 = vpow.pop %v847
    %v849 = vmul.f32 %v843, 1.442695
    %v850 = vpow.pop %v849
    %v851 = vmul.f32 %v844, 1.442695
    %v852 = vpow.pop %v851
    %v853 = vadd.f32 %v846, 1.0
    %v854 = vadd.f32 %v848, 1.0
    %v855 = vadd.f32 %v850, 1.0
    %v856 = vadd.f32 %v852, 1.0
    %v857 = vrcp.pop %v853
    %v858 = vmul.f32 1.0, %v857
    %v859 = vrcp.pop %v854
    %v860 = vmul.f32 1.0, %v859
    %v861 = vrcp.pop %v855
    %v862 = vmul.f32 1.0, %v861
    %v863 = vrcp.pop %v856
    %v864 = vmul.f32 1.0, %v863
    %v865 = vmul.f32 %v833, %v858
    %v866 = vmul.f32 %v835, %v860
    %v867 = vmul.f32 %v837, %v862
    %v868 = vmul.f32 %v839, %v864
    %v869 = vpack.c.bf16 %v867, %v865
    %v870 = vpack.c.bf16 %v868, %v866
    %v873 = vunpack.c.l.b16 %v869
    %v874 = vunpack.c.l.b16 %v870
    %v875 = vunpack.c.h.b16 %v869
    %v876 = vunpack.c.h.b16 %v870
    %v877 = vpack.c.b16 %v874, %v873
    %v878 = vpack.c.b16 %v876, %v875
    %881 = vst [vmem:[%s8] sm:$0xff] %v877
    %882 = vst [vmem:[%s8 + $0x8] sm:$0xff] %v878
    %v883 = vld [vmem:[%s3] sm:$0xf]
    %v884 = vld [vmem:[%s3 + $0x4] sm:$0xf]
    %v885 = vld [vmem:[%s3 + $0x8] sm:$0xf]
    %v886 = vld [vmem:[%s3 + $0xc] sm:$0xf]
    %v887 = vld [vmem:[%s3 + $0x10] sm:$0xf]
    %v888 = vld [vmem:[%s3 + $0x14] sm:$0xf]
    %v889 = vld [vmem:[%s3 + $0x18] sm:$0xf]
    %v890 = vld [vmem:[%s3 + $0x1c] sm:$0xf]
    %v891 = vld [vmem:[%s3 + $0x20] sm:$0xf]
    %v892 = vld [vmem:[%s3 + $0x24] sm:$0xf]
    %v893 = vld [vmem:[%s3 + $0x28] sm:$0xf]
    %v894 = vld [vmem:[%s3 + $0x2c] sm:$0xf]
    %v895 = vld [vmem:[%s3 + $0x30] sm:$0xf]
    %v896 = vld [vmem:[%s3 + $0x34] sm:$0xf]
    %v897 = vld [vmem:[%s3 + $0x38] sm:$0xf]
    %v898 = vld [vmem:[%s3 + $0x3c] sm:$0xf]
    %v899 = vld [vmem:[%s3 + $0x40] sm:$0xf]
    %v900 = vld [vmem:[%s3 + $0x44] sm:$0xf]
    %v901 = vld [vmem:[%s3 + $0x48] sm:$0xf]
    %v902 = vld [vmem:[%s3 + $0x4c] sm:$0xf]
    %v903 = vld [vmem:[%s3 + $0x50] sm:$0xf]
    %v904 = vld [vmem:[%s3 + $0x54] sm:$0xf]
    %v905 = vld [vmem:[%s3 + $0x58] sm:$0xf]
    %v906 = vld [vmem:[%s3 + $0x5c] sm:$0xf]
    %v907 = vld [vmem:[%s3 + $0x60] sm:$0xf]
    %v908 = vld [vmem:[%s3 + $0x64] sm:$0xf]
    %v909 = vld [vmem:[%s3 + $0x68] sm:$0xf]
    %v910 = vld [vmem:[%s3 + $0x6c] sm:$0xf]
    %v911 = vld [vmem:[%s3 + $0x70] sm:$0xf]
    %v912 = vld [vmem:[%s3 + $0x74] sm:$0xf]
    %v913 = vld [vmem:[%s3 + $0x78] sm:$0xf]
    %v914 = vld [vmem:[%s3 + $0x7c] sm:$0xf]
    %v915 = vld [vmem:[%s4] sm:$0x1]
    %v917 = vlaneseq
    %v918 = vshrl.u32 %v917, 7
    %v919 = vsub.s32 0, %v918
    %v920 = vrot.slane %v915, %v919
    %v954 = vunpack.c.l.b16 %v883
    %v955 = vunpack.c.l.b16 %v884
    %v956 = vunpack.c.l.b16 %v885
    %v957 = vunpack.c.l.b16 %v886
    %v958 = vunpack.c.l.b16 %v887
    %v959 = vunpack.c.l.b16 %v888
    %v960 = vunpack.c.l.b16 %v889
    %v961 = vunpack.c.l.b16 %v890
    %v962 = vunpack.c.l.b16 %v891
    %v963 = vunpack.c.l.b16 %v892
    %v964 = vunpack.c.l.b16 %v893
    %v965 = vunpack.c.l.b16 %v894
    %v966 = vunpack.c.l.b16 %v895
    %v967 = vunpack.c.l.b16 %v896
    %v968 = vunpack.c.l.b16 %v897
    %v969 = vunpack.c.l.b16 %v898
    %v970 = vunpack.c.l.b16 %v899
    %v971 = vunpack.c.l.b16 %v900
    %v972 = vunpack.c.l.b16 %v901
    %v973 = vunpack.c.l.b16 %v902
    %v974 = vunpack.c.l.b16 %v903
    %v975 = vunpack.c.l.b16 %v904
    %v976 = vunpack.c.l.b16 %v905
    %v977 = vunpack.c.l.b16 %v906
    %v978 = vunpack.c.l.b16 %v907
    %v979 = vunpack.c.l.b16 %v908
    %v980 = vunpack.c.l.b16 %v909
    %v981 = vunpack.c.l.b16 %v910
    %v982 = vunpack.c.l.b16 %v911
    %v983 = vunpack.c.l.b16 %v912
    %v984 = vunpack.c.l.b16 %v913
    %v985 = vunpack.c.l.b16 %v914
    %v986 = vpack.c.b16 %v955, %v954
    %v987 = vpack.c.b16 %v957, %v956
    %v988 = vpack.c.b16 %v959, %v958
    %v989 = vpack.c.b16 %v961, %v960
    %v990 = vpack.c.b16 %v963, %v962
    %v991 = vpack.c.b16 %v965, %v964
    %v992 = vpack.c.b16 %v967, %v966
    %v993 = vpack.c.b16 %v969, %v968
    %v994 = vpack.c.b16 %v971, %v970
    %v995 = vpack.c.b16 %v973, %v972
    %v996 = vpack.c.b16 %v975, %v974
    %v997 = vpack.c.b16 %v977, %v976
    %v998 = vpack.c.b16 %v979, %v978
    %v999 = vpack.c.b16 %v981, %v980
    %v1000 = vpack.c.b16 %v983, %v982
    %v1001 = vpack.c.b16 %v985, %v984
    %1018 = vmatprep.subr.bf16.mxu0 0
    %1019 = vmatpush1.bf16.msra.mxu0 %v993
    %1020 = vmatprep.subr.bf16.mxu0 0
    %1021 = vmatpush1.bf16.msra.mxu0 %v992
    %1022 = vmatprep.subr.bf16.mxu0 0
    %1023 = vmatpush1.bf16.msra.mxu0 %v991
    %1024 = vmatprep.subr.bf16.mxu0 0
    %1025 = vmatpush1.bf16.msra.mxu0 %v990
    %1026 = vmatprep.subr.bf16.mxu0 0
    %1027 = vmatpush1.bf16.msra.mxu0 %v989
    %1028 = vmatprep.subr.bf16.mxu0 0
    %1029 = vmatpush1.bf16.msra.mxu0 %v988
    %1030 = vmatprep.subr.bf16.mxu0 0
    %1031 = vmatpush1.bf16.msra.mxu0 %v987
    %1032 = vmatprep.subr.bf16.mxu0 0
    %1033 = vmatpush1.bf16.msra.mxu0 %v986
    %1034 = vmatprep.subr.bf16.mxu0 0
    %1035 = vmatpush2.bf16.msra.mxu0 %v1001
    %1036 = vmatprep.subr.bf16.mxu0 0
    %1037 = vmatpush2.bf16.msra.mxu0 %v1000
    %1038 = vmatprep.subr.bf16.mxu0 0
    %1039 = vmatpush2.bf16.msra.mxu0 %v999
    %1040 = vmatprep.subr.bf16.mxu0 0
    %1041 = vmatpush2.bf16.msra.mxu0 %v998
    %1042 = vmatprep.subr.bf16.mxu0 0
    %1043 = vmatpush2.bf16.msra.mxu0 %v997
    %1044 = vmatprep.subr.bf16.mxu0 0
    %1045 = vmatpush2.bf16.msra.mxu0 %v996
    %1046 = vmatprep.subr.bf16.mxu0 0
    %1047 = vmatpush2.bf16.msra.mxu0 %v995
    %1048 = vmatprep.subr.bf16.mxu0 0
    %1049 = vmatpush2.bf16.msra.mxu0 %v994
    %1050 = vmatprep.mubr.bf16.mxu0 %v870
    %1051 = vmatmul.mubr.bf16.gmra.mxu0 %v869
    %v1052 = vpop.f32.mrf.mxu0
    %v1053 = vadd.f32 %v920, %v1052
    %v1054 = vpop.f32.mrf.mxu0
    %v1055 = vpop.f32.mrf.mxu0
    %v1056 = vadd.f32 %v920, %v1055
    %v1057 = vpop.f32.mrf.mxu0
    %1058 = vdwg.mxu0
    %v1059 = vxor.u32 %v1053, 2147483648
    %v1060 = vxor.u32 %v1056, 2147483648
    %v1061 = vmul.f32 %v1059, 1.442695
    %v1062 = vpow.pop %v1061
    %v1063 = vmul.f32 %v1060, 1.442695
    %v1064 = vpow.pop %v1063
    %v1065 = vadd.f32 %v1062, 1.0
    %v1066 = vadd.f32 %v1064, 1.0
    %v1067 = vrcp.pop %v1065
    %v1068 = vmul.f32 1.0, %v1067
    %v1069 = vrcp.pop %v1066
    %v1070 = vmul.f32 1.0, %v1069
    %v1071 = vmul.f32 %v1053, %v1068
    %v1072 = vmul.f32 %v1056, %v1070
    %v1073 = vpack.c.bf16 %v1072, %v1071
    %v1075 = vunpack.c.l.b16 %v1073
    %v1076 = vunpack.c.h.b16 %v1073
    %v1077 = vpack.c.b16 %v1075, %v1075
    %v1078 = vpack.c.b16 %v1076, %v1076
    %1081 = vst [vmem:[%s9] sm:$0xf] %v1077
    %1082 = vst [vmem:[%s9 + $0x4] sm:$0xf] %v1078
    %v1083 = vxor.u32 %v1071, 2147483648
    %v1084 = vxor.u32 %v1072, 2147483648
    %v1085 = vmul.f32 %v1083, 1.442695
    %v1086 = vpow.pop %v1085
    %v1087 = vmul.f32 %v1084, 1.442695
    %v1088 = vpow.pop %v1087
    %v1089 = vadd.f32 %v1086, 1.0
    %v1090 = vadd.f32 %v1088, 1.0
    %v1091 = vrcp.pop %v1089
    %v1092 = vmul.f32 1.0, %v1091
    %v1093 = vrcp.pop %v1090
    %v1094 = vmul.f32 1.0, %v1093
    %v1095 = vmul.f32 %v1071, %v1092
    %v1096 = vmul.f32 %v1072, %v1094
    %v1097 = vpack.c.bf16 %v1096, %v1095
    %v1098 = vld [vmem:[%s5] sm:$0xf]
    %v1099 = vld [vmem:[%s5 + $0x4] sm:$0xf]
    %v1100 = vld [vmem:[%s5 + $0x8] sm:$0xf]
    %v1101 = vld [vmem:[%s5 + $0xc] sm:$0xf]
    %v1102 = vld [vmem:[%s5 + $0x10] sm:$0xf]
    %v1103 = vld [vmem:[%s5 + $0x14] sm:$0xf]
    %v1104 = vld [vmem:[%s5 + $0x18] sm:$0xf]
    %v1105 = vld [vmem:[%s5 + $0x1c] sm:$0xf]
    %v1106 = vld [vmem:[%s5 + $0x20] sm:$0xf]
    %v1107 = vld [vmem:[%s5 + $0x24] sm:$0xf]
    %v1108 = vld [vmem:[%s5 + $0x28] sm:$0xf]
    %v1109 = vld [vmem:[%s5 + $0x2c] sm:$0xf]
    %v1110 = vld [vmem:[%s5 + $0x30] sm:$0xf]
    %v1111 = vld [vmem:[%s5 + $0x34] sm:$0xf]
    %v1112 = vld [vmem:[%s5 + $0x38] sm:$0xf]
    %v1113 = vld [vmem:[%s5 + $0x3c] sm:$0xf]
    %v1114 = vld [vmem:[%s6] sm:$0x1]
    %v1116 = vlaneseq
    %v1117 = vshrl.u32 %v1116, 7
    %v1118 = vsub.s32 0, %v1117
    %v1119 = vrot.slane %v1114, %v1118
    %v1137 = vunpack.c.l.b16 %v1098
    %v1138 = vunpack.c.l.b16 %v1099
    %v1139 = vunpack.c.l.b16 %v1100
    %v1140 = vunpack.c.l.b16 %v1101
    %v1141 = vunpack.c.l.b16 %v1102
    %v1142 = vunpack.c.l.b16 %v1103
    %v1143 = vunpack.c.l.b16 %v1104
    %v1144 = vunpack.c.l.b16 %v1105
    %v1145 = vunpack.c.l.b16 %v1106
    %v1146 = vunpack.c.l.b16 %v1107
    %v1147 = vunpack.c.l.b16 %v1108
    %v1148 = vunpack.c.l.b16 %v1109
    %v1149 = vunpack.c.l.b16 %v1110
    %v1150 = vunpack.c.l.b16 %v1111
    %v1151 = vunpack.c.l.b16 %v1112
    %v1152 = vunpack.c.l.b16 %v1113
    %v1153 = vpack.c.b16 %v1138, %v1137
    %v1154 = vpack.c.b16 %v1140, %v1139
    %v1155 = vpack.c.b16 %v1142, %v1141
    %v1156 = vpack.c.b16 %v1144, %v1143
    %v1157 = vpack.c.b16 %v1146, %v1145
    %v1158 = vpack.c.b16 %v1148, %v1147
    %v1159 = vpack.c.b16 %v1150, %v1149
    %v1160 = vpack.c.b16 %v1152, %v1151
    %1169 = vmatprep.subr.bf16.mxu0 0
    %1170 = vmatpush1.bf16.msra.mxu0 %v1160
    %1171 = vmatprep.subr.bf16.mxu0 0
    %1172 = vmatpush1.bf16.msra.mxu0 %v1159
    %1173 = vmatprep.subr.bf16.mxu0 0
    %1174 = vmatpush1.bf16.msra.mxu0 %v1158
    %1175 = vmatprep.subr.bf16.mxu0 0
    %1176 = vmatpush1.bf16.msra.mxu0 %v1157
    %1177 = vmatprep.subr.bf16.mxu0 0
    %1178 = vmatpush1.bf16.msra.mxu0 %v1156
    %1179 = vmatprep.subr.bf16.mxu0 0
    %1180 = vmatpush1.bf16.msra.mxu0 %v1155
    %1181 = vmatprep.subr.bf16.mxu0 0
    %1182 = vmatpush1.bf16.msra.mxu0 %v1154
    %1183 = vmatprep.subr.bf16.mxu0 0
    %1184 = vmatpush1.bf16.msra.mxu0 %v1153
    %1185 = vmatprep.subr.bf16.mxu0 0
    %1186 = vmatpush2.bf16.msra.mxu0 0
    %1187 = vmatprep.subr.bf16.mxu0 0
    %1188 = vmatpush2.bf16.msra.mxu0 0
    %1189 = vmatprep.subr.bf16.mxu0 0
    %1190 = vmatpush2.bf16.msra.mxu0 0
    %1191 = vmatprep.subr.bf16.mxu0 0
    %1192 = vmatpush2.bf16.msra.mxu0 0
    %1193 = vmatprep.subr.bf16.mxu0 0
    %1194 = vmatpush2.bf16.msra.mxu0 0
    %1195 = vmatprep.subr.bf16.mxu0 0
    %1196 = vmatpush2.bf16.msra.mxu0 0
    %1197 = vmatprep.subr.bf16.mxu0 0
    %1198 = vmatpush2.bf16.msra.mxu0 0
    %1199 = vmatprep.subr.bf16.mxu0 0
    %1200 = vmatpush2.bf16.msra.mxu0 0
    %1201 = vmatprep.mubr.bf16.mxu0 0
    %1202 = vmatmul.mubr.bf16.gmra.mxu0 %v1097
    %v1203 = vpop.f32.mrf.mxu0
    %v1204 = vadd.f32 %v1119, %v1203
    %v1205 = vpop.f32.mrf.mxu0
    %v1206 = vpop.f32.mrf.mxu0
    %v1207 = vadd.f32 %v1119, %v1206
    %v1208 = vpop.f32.mrf.mxu0
    %1209 = vdwg.mxu0
    %v1210 = vxor.u32 %v1204, 2147483648
    %v1211 = vxor.u32 %v1207, 2147483648
    %v1212 = vmul.f32 %v1210, 1.442695
    %v1213 = vpow.pop %v1212
    %v1214 = vmul.f32 %v1211, 1.442695
    %v1215 = vpow.pop %v1214
    %v1216 = vadd.f32 %v1213, 1.0
    %v1217 = vadd.f32 %v1215, 1.0
    %v1218 = vrcp.pop %v1216
    %v1219 = vmul.f32 1.0, %v1218
    %v1220 = vrcp.pop %v1217
    %v1221 = vmul.f32 1.0, %v1220
    %v1222 = vmul.f32 %v1204, %v1219
    %v1223 = vmul.f32 %v1207, %v1221
    %v1224 = vlaneseq
    %v1225 = vand.u32 %v1224, 127
    %vm1226 = vcmp.lt.s32.totalorder %v1225, 10
    %v1227 = vsel %vm1226, %v1222, -1e+30
    %v1228 = vsel %vm1226, %v1223, -1e+30
    %1229 = vmax.xlane.f32.xlu0 %v1227
    %v1230 = vpop.xlane.xlu0 %1229
    %1231 = vmax.xlane.f32.xlu0 %v1228
    %v1232 = vpop.xlane.xlu0 %1231
    %v1233 = vsub.f32 %v1227, %v1230
    %v1234 = vsub.f32 %v1228, %v1232
    %v1235 = vmul.f32 %v1233, 1.442695
    %v1236 = vpow.pop %v1235
    %v1237 = vmul.f32 %v1234, 1.442695
    %v1238 = vpow.pop %v1237
    %1239 = vadd.xlane.f32.xlu0 %v1236
    %v1240 = vpop.xlane.xlu0 %1239
    %1241 = vadd.xlane.f32.xlu0 %v1238
    %v1242 = vpop.xlane.xlu0 %1241
    %v1243 = vrcp.pop %v1240
    %v1244 = vmul.f32 %v1236, %v1243
    %v1245 = vrcp.pop %v1242
    %v1246 = vmul.f32 %v1238, %v1245
    %1247 = vst [vmem:[%s7] sm:$0xff] %v1244
    %1248 = vst [vmem:[%s7 + $0x8] sm:$0xff] %v1246
    // Predicated region
    $region34: #{classifier_forward.1} parent=1 // pred_check
      _
    $region35: #{classifier_forward.1} parent=1 // pred_check_branch
      %1250 = sbr.rel (0) target = $region37
    $region36: #{classifier_forward.1} parent=1 // pred_region
      _
    $region37: #{classifier_forward.1} parent=1 // pred_fallthru
      _
    // Predicated region
    $region38: #{classifier_forward.1} parent=1 // pred_check
      _
    $region39: #{classifier_forward.1} parent=1 // pred_check_branch
      %1252 = sbr.rel (0) target = $region41
    $region40: #{classifier_forward.1} parent=1 // pred_region
      _
    $region41: #{classifier_forward.1} parent=1 // pred_fallthru
      _
    // Predicated region
    $region42: #{classifier_forward.1} parent=1 // pred_check
      _
    $region43: #{classifier_forward.1} parent=1 // pred_check_branch
      %1254 = sbr.rel (0) target = $region45
    $region44: #{classifier_forward.1} parent=1 // pred_region
      _
    $region45: #{classifier_forward.1} parent=1 // pred_fallthru
      _
    // Predicated region
    $region46: #{classifier_forward.1} parent=1 // pred_check
      _
    $region47: #{classifier_forward.1} parent=1 // pred_check_branch
      %1256 = sbr.rel (0) target = $region49
    $region48: #{classifier_forward.1} parent=1 // pred_region
      _
    $region49: #{classifier_forward.1} parent=1 // pred_fallthru
      _
    // Predicated region
    $region50: #{classifier_forward.1} parent=1 // pred_check
      _
    $region51: #{classifier_forward.1} parent=1 // pred_check_branch
      %1258 = sbr.rel (0) target = $region53
    $region52: #{classifier_forward.1} parent=1 // pred_region
      _
    $region53: #{classifier_forward.1} parent=1 // pred_fallthru
      _
    // Predicated region
    $region54: #{classifier_forward.1} parent=1 // pred_check
      _
    $region55: #{classifier_forward.1} parent=1 // pred_check_branch
      %1260 = sbr.rel (0) target = $region57
    $region56: #{classifier_forward.1} parent=1 // pred_region
      _
    $region57: #{classifier_forward.1} parent=1 // pred_fallthru
      _
    %1261 = vsyncpa [#allocation3], 1

</llo_original>
